<compile_context>
chip_gen: v7x
topology: tpu7x:2x2x1
jax: 0.10.0
libtpu: 0.0.40
codegen_flags: <defaults>
</compile_context>

<pallas_src>
import math

import jax
import jax.numpy as jnp
from jax.experimental import pallas as pl
from jax.experimental.pallas import tpu as pltpu


def keyless_atten_kernel(x_ref, w_ref, scale_ref, shift_ref, o_ref):
    x = x_ref[...]                       # (TB, N, D), native dtype (no f32 tile copy)
    w = w_ref[...]                       # (1, D)

    # alpha logits = Linear(D -> 1, no bias): VPU mul + XLU lane reduction, f32 accum.
    logits = jnp.sum(x * w, axis=-1, keepdims=True, dtype=jnp.float32)   # (TB, N, 1)

    # softmax over dim=-2 (the N axis), numerically stable.  Normalize AFTER the
    # pooling reduction so the (TB, N, 1) alpha tensor is never materialized.
    m = jnp.max(logits, axis=1, keepdims=True)          # (TB, 1, 1)
    e = jnp.exp(logits - m)                              # (TB, N, 1) f32
    denom = jnp.sum(e, axis=1, keepdims=True)            # (TB, 1, 1)

    # Weighted sum over N; x's upcast fuses into the multiply (no f32 VMEM temp).
    acc = jnp.sum(x * e, axis=1)                          # (TB, D) f32
    pooled = acc / denom[:, 0, :]                         # exact normalization

    # Eval-mode BatchNorm1d folded into per-feature scale/shift, then ReLU.
    # TODO(synk): Dropout(p=0.2) is identity here (eval-mode semantics).
    y = pooled * scale_ref[...] + shift_ref[...]          # (TB, D)
    o_ref[...] = jnp.maximum(y, 0.0).astype(o_ref.dtype)


def keyless_atten(x, w, gamma, beta, running_mean, running_var, eps=1e-5):
    """x: (B, N, D), w: (D, 1).  Eval-mode forward; returns (B, D) in x.dtype."""
    B, N, D = x.shape

    # Fold BatchNorm1d running stats into per-feature scale/shift (f32).
    inv_std = 1.0 / jnp.sqrt(running_var.astype(jnp.float32) + eps)
    scale = gamma.astype(jnp.float32) * inv_std                         # (D,)
    shift = beta.astype(jnp.float32) - running_mean.astype(jnp.float32) * scale
    w_row = w.reshape(1, D)
    scale = scale.reshape(1, D)
    shift = shift.reshape(1, D)

    # ---- batch-tile sizing ---------------------------------------------------
    # ~8 MiB per x buffer amortizes the ~0.35 us/step overhead on every
    # generation; a hard 40 MiB per-step budget (2x double-buffered x tile +
    # f32 softmax temps + out tile) stays inside v7x's 64 MiB physical VMEM.
    itemsize = jnp.dtype(x.dtype).itemsize
    out_itemsize = itemsize
    row_bytes = N * D * itemsize                 # one batch row of x
    target_bytes = 8 * 1024 * 1024               # per x buffer (Pallas double-buffers)
    vmem_budget = 40 * 1024 * 1024
    vmem_limit = 48 * 1024 * 1024

    def step_bytes(t):
        return (2 * t * row_bytes            # double-buffered x tile
                + 3 * t * N * 4              # logits / exp / temps (f32)
                + t * D * 4                  # pooled accumulator (f32)
                + 2 * t * D * out_itemsize)  # double-buffered output tile

    tb = max(1, min(B, target_bytes // row_bytes))
    if B >= 16:
        # Keep >= 2 grid steps so both v7x TensorCores get work.
        tb = min(tb, pl.cdiv(B, 2))
    if tb < B:
        tb = max(8, (tb // 8) * 8)           # 8-aligned sublane dim (or full-extent B)
        while tb > 8 and step_bytes(tb) > vmem_budget:
            tb -= 8
    # TODO(synk): if a single 8-row tile still exceeds the budget (huge N*D),
    # add an N-axis grid dim with an online-softmax accumulator instead.

    grid = (pl.cdiv(B, tb),)

    cost = pl.CostEstimate(
        flops=4 * B * N * D,
        transcendentals=B * N,
        bytes_accessed=B * N * D * itemsize + B * D * out_itemsize + 3 * D * 4,
    )

    return pl.pallas_call(
        keyless_atten_kernel,
        out_shape=jax.ShapeDtypeStruct((B, D), x.dtype),
        grid=grid,
        in_specs=[
            # x: tiled over batch; N and D full-extent per tile (no padding of x).
            pl.BlockSpec((tb, N, D), lambda b: (b, 0, 0)),
            # w / scale / shift: constant index_map -> fetched once, stay resident.
            pl.BlockSpec((1, D), lambda b: (0, 0)),
            pl.BlockSpec((1, D), lambda b: (0, 0)),
            pl.BlockSpec((1, D), lambda b: (0, 0)),
        ],
        out_specs=pl.BlockSpec((tb, D), lambda b: (b, 0)),
        compiler_params=pltpu.CompilerParams(
            dimension_semantics=("parallel",),
            vmem_limit_bytes=vmem_limit,
        ),
        cost_estimate=cost,
    )(x, w_row, scale, shift)


if __name__ == "__main__":
    B, N, D = 2, 8, 32   # batch=2, seq/nodes=8, feature_dim=32

    key = jax.random.PRNGKey(0)
    kx, kw = jax.random.split(key)

    x = jax.random.normal(kx, (B, N, D), dtype=jnp.float32)

    # nn.Linear(D, 1, bias=False) initialized per weights_init:
    # fan_in=D, fan_out=1, bound=sqrt(6/(D+1)), uniform(-bound, bound)
    w_bound = math.sqrt(6.0 / (D + 1))
    w = jax.random.uniform(kw, (D, 1), minval=-w_bound, maxval=w_bound,
                           dtype=jnp.float32)

    # BatchNorm1d(D) parameters / running stats at PyTorch defaults
    gamma = jnp.ones((D,), jnp.float32)
    beta = jnp.zeros((D,), jnp.float32)
    running_mean = jnp.zeros((D,), jnp.float32)
    running_var = jnp.ones((D,), jnp.float32)

    out = keyless_atten(x, w, gamma, beta, running_mean, running_var)
    out = jax.block_until_ready(out)

    # Pure-JAX reference (same math as the PyTorch forward, eval mode)
    logits = x @ w                                     # (B, N, 1)
    alpha = jax.nn.softmax(logits, axis=-2)            # softmax over N
    pooled = jnp.sum(x * alpha, axis=-2)               # (B, D)
    ref = (pooled - running_mean) / jnp.sqrt(running_var + 1e-5) * gamma + beta
    ref = jnp.maximum(ref, 0.0)

    assert out.shape == (B, D)
    assert jnp.allclose(out, ref, atol=1e-4, rtol=1e-4), "mismatch vs reference"
    print("KERNEL_OK")
</pallas_src>

<mosaic_0001>
module attributes {stable_mosaic.version = 11 : i64} {
  func.func @keyless_atten_kernel(%arg0: i32, %arg1: memref<2x8x32xf32, #tpu.memory_space<vmem>>, %arg2: memref<1x32xf32, #tpu.memory_space<vmem>>, %arg3: memref<1x32xf32, #tpu.memory_space<vmem>>, %arg4: memref<1x32xf32, #tpu.memory_space<vmem>>, %arg5: memref<2x32xf32, #tpu.memory_space<vmem>>) attributes {dimension_semantics = [#tpu.dimension_semantics<parallel>], iteration_bounds = array<i64: 1>, scalar_prefetch = 0 : i64, scratch_operands = 0 : i64, tpu.core_type = #tpu.core_type<tc>, window_params = [{transform_indices = @transform_0, window_bounds = array<i64: 2, 8, 32>}, {pipeline_mode = #tpu.pipeline_mode<synchronous>, transform_indices = @transform_1, window_bounds = array<i64: 1, 32>}, {pipeline_mode = #tpu.pipeline_mode<synchronous>, transform_indices = @transform_2, window_bounds = array<i64: 1, 32>}, {pipeline_mode = #tpu.pipeline_mode<synchronous>, transform_indices = @transform_3, window_bounds = array<i64: 1, 32>}, {transform_indices = @transform_4, window_bounds = array<i64: 2, 32>}]} {
    %c0 = arith.constant 0 : index
    %c0_0 = arith.constant 0 : index
    %c0_1 = arith.constant 0 : index
    %0 = vector.load %arg1[%c0, %c0_0, %c0_1] : memref<2x8x32xf32, #tpu.memory_space<vmem>>, vector<2x8x32xf32>
    %c0_2 = arith.constant 0 : index
    %c0_3 = arith.constant 0 : index
    %1 = vector.load %arg2[%c0_2, %c0_3] : memref<1x32xf32, #tpu.memory_space<vmem>>, vector<1x32xf32>
    %2 = vector.shape_cast %1 : vector<1x32xf32> to vector<1x1x32xf32>
    %3 = vector.broadcast %2 : vector<1x1x32xf32> to vector<2x8x32xf32>
    %4 = arith.mulf %0, %3 : vector<2x8x32xf32>
    %cst = arith.constant dense<0.000000e+00> : vector<2x8xf32>
    %5 = vector.multi_reduction <add>, %4, %cst [2] : vector<2x8x32xf32> to vector<2x8xf32>
    %6 = vector.shape_cast %5 : vector<2x8xf32> to vector<2x8x1xf32>
    %cst_4 = arith.constant dense<0xFF800000> : vector<2x1xf32>
    %7 = vector.multi_reduction <maximumf>, %6, %cst_4 [1] : vector<2x8x1xf32> to vector<2x1xf32>
    %8 = vector.shape_cast %7 : vector<2x1xf32> to vector<2x1x1xf32>
    %9 = vector.broadcast %8 : vector<2x1x1xf32> to vector<2x8x1xf32>
    %10 = arith.subf %6, %9 : vector<2x8x1xf32>
    %11 = math.exp %10 : vector<2x8x1xf32>
    %cst_5 = arith.constant dense<0.000000e+00> : vector<2x1xf32>
    %12 = vector.multi_reduction <add>, %11, %cst_5 [1] : vector<2x8x1xf32> to vector<2x1xf32>
    %13 = vector.shape_cast %12 : vector<2x1xf32> to vector<2x1x1xf32>
    %14 = vector.broadcast %11 : vector<2x8x1xf32> to vector<2x8x32xf32>
    %15 = arith.mulf %0, %14 : vector<2x8x32xf32>
    %cst_6 = arith.constant dense<0.000000e+00> : vector<2x32xf32>
    %16 = vector.multi_reduction <add>, %15, %cst_6 [1] : vector<2x8x32xf32> to vector<2x32xf32>
    %17 = vector.shape_cast %13 : vector<2x1x1xf32> to vector<2x1xf32>
    %18 = vector.broadcast %17 : vector<2x1xf32> to vector<2x32xf32>
    %19 = arith.divf %16, %18 : vector<2x32xf32>
    %c0_7 = arith.constant 0 : index
    %c0_8 = arith.constant 0 : index
    %20 = vector.load %arg3[%c0_7, %c0_8] : memref<1x32xf32, #tpu.memory_space<vmem>>, vector<1x32xf32>
    %21 = vector.broadcast %20 : vector<1x32xf32> to vector<2x32xf32>
    %22 = arith.mulf %19, %21 : vector<2x32xf32>
    %c0_9 = arith.constant 0 : index
    %c0_10 = arith.constant 0 : index
    %23 = vector.load %arg4[%c0_9, %c0_10] : memref<1x32xf32, #tpu.memory_space<vmem>>, vector<1x32xf32>
    %24 = vector.broadcast %23 : vector<1x32xf32> to vector<2x32xf32>
    %25 = arith.addf %22, %24 : vector<2x32xf32>
    %cst_11 = arith.constant 0.000000e+00 : f32
    %26 = vector.broadcast %cst_11 : f32 to vector<2x32xf32>
    %27 = arith.maximumf %25, %26 : vector<2x32xf32>
    %c0_12 = arith.constant 0 : index
    %c0_13 = arith.constant 0 : index
    %28 = vector.load %arg5[%c0_12, %c0_13] : memref<2x32xf32, #tpu.memory_space<vmem>>, vector<2x32xf32>
    tpu.vector_store %arg5[%c0_12, %c0_13], %27 {strides = array<i32>} : memref<2x32xf32, #tpu.memory_space<vmem>>, vector<2x32xf32>,
    return
  }
  func.func @transform_0(%arg0: i32) -> (i32, i32, i32) {
    %c0_i32 = arith.constant 0 : i32
    %c0_i32_0 = arith.constant 0 : i32
    %c0_i32_1 = arith.constant 0 : i32
    return %arg0, %c0_i32, %c0_i32_0 : i32, i32, i32
  }
  func.func @transform_1(%arg0: i32) -> (i32, i32) {
    %c0_i32 = arith.constant 0 : i32
    %c0_i32_0 = arith.constant 0 : i32
    %c0_i32_1 = arith.constant 0 : i32
    return %c0_i32, %c0_i32_0 : i32, i32
  }
  func.func @transform_2(%arg0: i32) -> (i32, i32) {
    %c0_i32 = arith.constant 0 : i32
    %c0_i32_0 = arith.constant 0 : i32
    %c0_i32_1 = arith.constant 0 : i32
    return %c0_i32, %c0_i32_0 : i32, i32
  }
  func.func @transform_3(%arg0: i32) -> (i32, i32) {
    %c0_i32 = arith.constant 0 : i32
    %c0_i32_0 = arith.constant 0 : i32
    %c0_i32_1 = arith.constant 0 : i32
    return %c0_i32, %c0_i32_0 : i32, i32
  }
  func.func @transform_4(%arg0: i32) -> (i32, i32) {
    %c0_i32 = arith.constant 0 : i32
    %c0_i32_0 = arith.constant 0 : i32
    return %arg0, %c0_i32 : i32, i32
  }
}

</mosaic_0001>

<llo_original>
// kernel: tpu_custom_call.1
$region0: #{tpu_custom_call.1}
  #allocation0 [shape = 'u32[]', space=smem, size = 0x4, offset = 0x4, fixed_abs, tag = 'smem constant byte address 0x4 - core index']
  #allocation1 [shape = 'u32[144,128]{1,0:T(1,128)}', space=vmem, size = 0x12000, scoped, tag = 'internal scratch']
  %s0 = inlined_call_operand.hbm [shape: f32[2,8,32], index: 0, kind: input, shape index: {}]
  %s1 = inlined_call_operand.vmem [shape: f32[1,32], index: 1, kind: input, shape index: {}]
  %s2 = inlined_call_operand.vmem [shape: f32[1,32], index: 2, kind: input, shape index: {}]
  %s3 = inlined_call_operand.vmem [shape: f32[1,32], index: 3, kind: input, shape index: {}]
  %s4 = inlined_call_operand.hbm [shape: f32[2,32], index: 4, kind: output, shape index: {}]
  %s5 = sld [smem:[#allocation0]]
  $region30: #{tpu_custom_call.1} parent=0
    _
  %s7 = ssub.s32 1, %s5
  %s8 = scalar_select 0, %s7, %s5
  $region1: #{tpu_custom_call.1} parent=0
    #allocation2 [shape = 'u8[8192]{0}', space=vmem, size = 0x2000, scoped, tag = 'input window, operand 0, single buffered']
    #allocation3 [shape = 's32[1]{0}', space=sflag, size = 0x4, scoped, tag = 'scoped memory for tpu_custom_call.1']
    #allocation4 [shape = 's32[1]{0}', space=sflag, size = 0x4, scoped, tag = 'scoped memory for tpu_custom_call.1']
    #allocation5 [shape = 'u8[1024]{0}', space=vmem, size = 0x400, scoped, tag = 'output window, operand 0, single buffered']
    %9 = vsyncpa [#allocation3], 0
    %10 = vsyncpa [#allocation4], 0
    // Predicated region
    $region2: #{tpu_custom_call.1} parent=1 // pred_check
      _
    $region3: #{tpu_custom_call.1} parent=1 // pred_check_branch
      %12 = sbr.rel (0) target = $region5
    $region4: #{tpu_custom_call.1} parent=1 // pred_region
      %s14 = ssub.s32 256, 256
      %15 = vsyncadd [#allocation3], %s14
      %s16 = sshll.u32 [#allocation2], 4
      %s17 = int_to_ptr.vmem [resolvable:$true] %s16
      %22 = dma.hbm_to_vmem [thread:$0]  %s0, 256, %s17, [#allocation3], 128, 128, 8
    $region5: #{tpu_custom_call.1} parent=1 // pred_fallthru
      _
    // Predicated region
    $region6: #{tpu_custom_call.1} parent=1 // pred_check
      _
    $region7: #{tpu_custom_call.1} parent=1 // pred_check_branch
      %24 = sbr.rel (0) target = $region9
    $region8: #{tpu_custom_call.1} parent=1 // pred_region
      _
    $region9: #{tpu_custom_call.1} parent=1 // pred_fallthru
      _
    // Predicated region
    $region10: #{tpu_custom_call.1} parent=1 // pred_check
      _
    $region11: #{tpu_custom_call.1} parent=1 // pred_check_branch
      %26 = sbr.rel (0) target = $region13
    $region12: #{tpu_custom_call.1} parent=1 // pred_region
      _
    $region13: #{tpu_custom_call.1} parent=1 // pred_fallthru
      _
    // Predicated region
    $region14: #{tpu_custom_call.1} parent=1 // pred_check
      _
    $region15: #{tpu_custom_call.1} parent=1 // pred_check_branch
      %28 = sbr.rel (0) target = $region17
    $region16: #{tpu_custom_call.1} parent=1 // pred_region
      _
    $region17: #{tpu_custom_call.1} parent=1 // pred_fallthru
      _
    // Predicated region
    $region18: #{tpu_custom_call.1} parent=1 // pred_check
      _
    $region19: #{tpu_custom_call.1} parent=1 // pred_check_branch
      %30 = sbr.rel (0) target = $region21
    $region20: #{tpu_custom_call.1} parent=1 // pred_region
      %31 = dma.done [#allocation3], 256
    $region21: #{tpu_custom_call.1} parent=1 // pred_fallthru
      _
    %v32 = vld [vmem:[#allocation2] sm:$0xff]
    %v33 = vld [vmem:[#allocation2 + $0x8] sm:$0xff]
    %v34 = vld [vmem:[%s1] sm:$0x1]
    %v36 = vlaneseq
    %v37 = vshrl.u32 %v36, 7
    %v38 = vsub.s32 0, %v37
    %v39 = vrot.slane %v34, %v38
    %v41 = vmul.f32 %v32, %v39
    %v42 = vmul.f32 %v33, %v39
    %vm43 = vcmask 261120
    %v44 = vsel %vm43, %v41, 0.0
    %45 = vadd.xlane.f32.xlu0 %v44
    %v46 = vpop.xlane.xlu0 %45
    %v47 = vsel %vm43, %v42, 0.0
    %48 = vadd.xlane.f32.xlu0 %v47
    %v49 = vpop.xlane.xlu0 %48
    %v50 = vrot.slane %v46, 4
    %v51 = vmax.f32 %v46, %v50
    %v52 = vrot.slane %v51, 2
    %v53 = vmax.f32 %v51, %v52
    %v54 = vrot.slane %v53, 1
    %v55 = vmax.f32 %v53, %v54
    %v56 = vrot.slane %v49, 4
    %v57 = vmax.f32 %v49, %v56
    %v58 = vrot.slane %v57, 2
    %v59 = vmax.f32 %v57, %v58
    %v60 = vrot.slane %v59, 1
    %v61 = vmax.f32 %v59, %v60
    %v62 = vsub.f32 %v46, %v55
    %v63 = vsub.f32 %v49, %v61
    %v64 = vmul.f32 %v62, 1.442695
    %v65 = vpow.pop %v64
    %v66 = vmul.f32 %v63, 1.442695
    %v67 = vpow.pop %v66
    %v68 = vrot.slane %v65, 4
    %v69 = vadd.f32 %v65, %v68
    %v70 = vrot.slane %v69, 2
    %v71 = vadd.f32 %v69, %v70
    %v72 = vrot.slane %v71, 1
    %v73 = vadd.f32 %v71, %v72
    %v74 = vrot.slane %v67, 4
    %v75 = vadd.f32 %v67, %v74
    %v76 = vrot.slane %v75, 2
    %v77 = vadd.f32 %v75, %v76
    %v78 = vrot.slane %v77, 1
    %v79 = vadd.f32 %v77, %v78
    %v80 = vmul.f32 %v32, %v65
    %v81 = vmul.f32 %v33, %v67
    %v82 = vsel %vm43, %v80, 0.0
    %v83 = vrot.slane %v82, 4
    %v84 = vadd.f32 %v82, %v83
    %v85 = vrot.slane %v84, 2
    %v86 = vadd.f32 %v84, %v85
    %v87 = vrot.slane %v86, 1
    %v88 = vadd.f32 %v86, %v87
    %v89 = vsel %vm43, %v81, 0.0
    %v90 = vrot.slane %v89, 4
    %v91 = vadd.f32 %v89, %v90
    %v92 = vrot.slane %v91, 2
    %v93 = vadd.f32 %v91, %v92
    %v94 = vrot.slane %v93, 1
    %v95 = vadd.f32 %v93, %v94
    %v96 = vrcp.pop %v73
    %v97 = vmul.f32 %v88, %v96
    %v98 = vrcp.pop %v79
    %v99 = vmul.f32 %v95, %v98
    %v100 = vld [vmem:[%s2] sm:$0x1]
    %v102 = vlaneseq
    %v103 = vshrl.u32 %v102, 7
    %v104 = vsub.s32 0, %v103
    %v105 = vrot.slane %v100, %v104
    %v107 = vmul.f32 %v97, %v105
    %v108 = vmul.f32 %v99, %v105
    %v109 = vld [vmem:[%s3] sm:$0x1]
    %v111 = vlaneseq
    %v112 = vshrl.u32 %v111, 7
    %v113 = vsub.s32 0, %v112
    %v114 = vrot.slane %v109, %v113
    %v116 = vadd.f32 %v107, %v114
    %v117 = vadd.f32 %v108, %v114
    %v118 = vmax.f32 %v116, 0.0
    %v119 = vmax.f32 %v117, 0.0
    %v122 = vrot.slane %v119, 7
    %vm123 = vcmask 1041409
    %v124 = vsel %vm123, %v122, %v118
    %vm126 = vcmask 254976
    %127 = vst.msk [vmem:[#allocation5] sm:$0x3] %vm126, %v124
    // Predicated region
    $region22: #{tpu_custom_call.1} parent=1 // pred_check
      _
    $region23: #{tpu_custom_call.1} parent=1 // pred_check_branch
      %129 = sbr.rel (0) target = $region25
    $region24: #{tpu_custom_call.1} parent=1 // pred_region
      %s131 = ssub.s32 32, 32
      %132 = vsyncadd [#allocation4], %s131
      %s134 = sshll.u32 [#allocation5], 4
      %s135 = int_to_ptr.vmem [resolvable:$true] %s134
      %137 = dma.vmem_to_hbm [thread:$0]  %s135, 32, %s4, [#allocation4]
    $region25: #{tpu_custom_call.1} parent=1 // pred_fallthru
      _
    // Predicated region
    $region26: #{tpu_custom_call.1} parent=1 // pred_check
      _
    $region27: #{tpu_custom_call.1} parent=1 // pred_check_branch
      %139 = sbr.rel (0) target = $region29
    $region28: #{tpu_custom_call.1} parent=1 // pred_region
      %140 = dma.done [#allocation4], 32
    $region29: #{tpu_custom_call.1} parent=1 // pred_fallthru
      _
    %141 = vsyncpa [#allocation3], 1
    %142 = vsyncpa [#allocation4], 1

</llo_original>
